<compile_context>
chip_gen: v7x
topology: tpu7x:2x2x1
jax: 0.10.0
libtpu: 0.0.40
codegen_flags: <defaults>
</compile_context>

<pallas_src>
import jax
import jax.numpy as jnp
from jax import lax
from jax.experimental import pallas as pl
from jax.experimental.pallas import tpu as pltpu


_LANES = 128
_VMEM_LIMIT = 32 * 1024 * 1024   # scoped-VMEM ceiling: safe on v5e / v6e / v7x
_VMEM_BUDGET = 14 * 1024 * 1024  # target working set (headroom under the limit)


def _round_up(a, b):
    return ((a + b - 1) // b) * b


# ---------------------------------------------------------------------------
# Small-T path:  T <= 64 and 128 % T == 0  (T is then a power of two).
# G = 128 // T rows are packed per 128-lane super-row -> lane-dense I/O.
# ---------------------------------------------------------------------------
def _make_grouped_kernel(T):
    n_doubling = T.bit_length() - 1  # log2(T), T is a power of two

    def group_shift(v, d, t_idx):
        # w[..., c] = v[..., group_start(c) + (t + d) % T]   (static 0 < d < T)
        C = v.shape[-1]
        a = pltpu.roll(v, C - d, axis=1)      # value at lane c + d
        b = pltpu.roll(v, T - d, axis=1)      # value at lane c + d - T
        return jnp.where(t_idx < (T - d), a, b)

    def kernel(x_ref, o_ref):
        x = x_ref[...].astype(jnp.float32)                       # (Rb, 128)
        t_idx = lax.broadcasted_iota(jnp.int32, x.shape, 1) % T  # in-group idx

        cnt = jnp.zeros_like(x)   # #{j in group : x_j > x_i}
        sgt = jnp.zeros_like(x)   # sum{x_j in group : x_j > x_i}
        m = x                     # running group max
        for s in range(1, T):
            p = group_shift(x, s, t_idx)
            m = jnp.maximum(m, p)
            gt = p > x
            cnt = cnt + jnp.where(gt, 1.0, 0.0)
            sgt = sgt + jnp.where(gt, p, 0.0)

        xs = x - m                # max-shift (support test is shift-invariant)
        sgt = sgt - cnt * m
        supp = (1.0 + cnt * xs) > sgt

        sv = jnp.where(supp, 1.0, 0.0)   # -> k (per-group sum)
        sx = jnp.where(supp, xs, 0.0)    # -> sum of support values (per group)
        d = 1
        for _ in range(n_doubling):      # cyclic doubling segment-sum
            sv = sv + group_shift(sv, d, t_idx)
            sx = sx + group_shift(sx, d, t_idx)
            d *= 2

        tau = (sx - 1.0) / sv
        o_ref[...] = jnp.maximum(xs - tau, 0.0).astype(o_ref.dtype)

    return kernel


def _sparsemax_grouped(x2):
    R, T = x2.shape
    G = _LANES // T
    C = _LANES

    Rq = pl.cdiv(R, G)
    # Big lane-dense blocks; keep grid extent >= 2 when possible (v7x megacore).
    block_rows = min(512, max(8, _round_up(pl.cdiv(Rq, 2), 8)))
    Rq_pad = _round_up(Rq, block_rows)
    R_pad = Rq_pad * G
    if R_pad != R:
        # Zero rows give a harmless uniform 1/T output and are sliced off.
        x2 = jnp.pad(x2, ((0, R_pad - R), (0, 0)))
    xg = x2.reshape(Rq_pad, C)

    out = pl.pallas_call(
        _make_grouped_kernel(T),
        out_shape=jax.ShapeDtypeStruct((Rq_pad, C), x2.dtype),
        grid_spec=pltpu.PrefetchScalarGridSpec(
            num_scalar_prefetch=0,
            grid=(Rq_pad // block_rows,),
            in_specs=[pl.BlockSpec((block_rows, C), lambda i: (i, 0))],
            out_specs=pl.BlockSpec((block_rows, C), lambda i: (i, 0)),
        ),
        compiler_params=pltpu.CompilerParams(
            dimension_semantics=("parallel",),
            vmem_limit_bytes=_VMEM_LIMIT,
        ),
    )(xg)
    return out.reshape(R_pad, T)[:R]


# ---------------------------------------------------------------------------
# General path: pairwise support search with the reduction (j) axis tiled in
# Tj-chunks so the (Rb, T, Tj) intermediate stays small and Rb is independent
# of T.
# ---------------------------------------------------------------------------
def _make_pairwise_kernel(T, Tj):
    nfull = T // Tj
    tail = T - nfull * Tj

    def kernel(x_ref, o_ref):
        x = x_ref[...].astype(jnp.float32)                    # (Rb, T)
        rmax = jnp.max(x, axis=-1, keepdims=True)
        x = x - rmax

        def stats(xc, cnt, sgt):
            gt = xc[:, None, :] > x[:, :, None]               # (Rb, T, tj) bool
            cnt = cnt + jnp.sum(jnp.where(gt, 1.0, 0.0), axis=-1)
            sgt = sgt + jnp.sum(jnp.where(gt, xc[:, None, :], 0.0), axis=-1)
            return cnt, sgt

        cnt = jnp.zeros_like(x)
        sgt = jnp.zeros_like(x)
        if nfull <= 4:
            for j in range(nfull):                            # short: unrolled
                cnt, sgt = stats(x[:, j * Tj:(j + 1) * Tj], cnt, sgt)
        else:
            def body(j, carry):
                j0 = pl.multiple_of(j * Tj, Tj)
                xc = x_ref[:, pl.ds(j0, Tj)].astype(jnp.float32) - rmax
                return stats(xc, *carry)
            cnt, sgt = lax.fori_loop(0, nfull, body, (cnt, sgt))
        if tail:
            cnt, sgt = stats(x[:, nfull * Tj:], cnt, sgt)

        supp = (1.0 + cnt * x) > sgt
        k = jnp.sum(jnp.where(supp, 1.0, 0.0), axis=-1, keepdims=True)
        ssum = jnp.sum(jnp.where(supp, x, 0.0), axis=-1, keepdims=True)
        tau = (ssum - 1.0) / k
        o_ref[...] = jnp.maximum(x - tau, 0.0).astype(o_ref.dtype)

    return kernel


def _pairwise_tiles(R, T):
    # Budget ~3 live (Rb,T,Tj) f32 pairwise slabs + ~8 (Rb,T) f32 row temps /
    # double-buffered I/O blocks.
    def est(rb, tj):
        return rb * 4 * (3 * T * tj + 8 * T)

    Tj = min(_LANES, T)
    while Tj > 8 and est(8, Tj) > _VMEM_BUDGET:
        Tj //= 2
    rb = max(8, ((_VMEM_BUDGET // (4 * (3 * T * Tj + 8 * T))) // 8) * 8)
    rb = min(rb, 512, max(8, _round_up(pl.cdiv(R, 2), 8)))
    return rb, Tj


def _sparsemax_pairwise(x2):
    R, T = x2.shape
    block_rows, Tj = _pairwise_tiles(R, T)
    R_pad = _round_up(R, block_rows)
    if R_pad != R:
        x2 = jnp.pad(x2, ((0, R_pad - R), (0, 0)))

    out = pl.pallas_call(
        _make_pairwise_kernel(T, Tj),
        out_shape=jax.ShapeDtypeStruct((R_pad, T), x2.dtype),
        grid_spec=pltpu.PrefetchScalarGridSpec(
            num_scalar_prefetch=0,
            grid=(R_pad // block_rows,),
            in_specs=[pl.BlockSpec((block_rows, T), lambda i: (i, 0))],
            out_specs=pl.BlockSpec((block_rows, T), lambda i: (i, 0)),
        ),
        compiler_params=pltpu.CompilerParams(
            dimension_semantics=("parallel",),
            vmem_limit_bytes=_VMEM_LIMIT,
        ),
    )(x2)
    return out[:R]


def sparsemax(x, dim=-1):
    """Sparsemax along `dim` (forward pass of the PyTorch module)."""
    x = jnp.moveaxis(x, dim, -1)
    lead = x.shape[:-1]
    T = x.shape[-1]
    R = 1
    for s in lead:
        R *= s
    x2 = x.reshape(R, T)

    if T <= 64 and _LANES % T == 0:
        out2 = _sparsemax_grouped(x2)
    else:
        # TODO(synk): a bisection-on-tau variant would cut the O(T^2) pairwise
        # work to ~30 passes per row for very long rows (T >= ~4k).
        out2 = _sparsemax_pairwise(x2)

    out = out2.reshape(lead + (T,))
    return jnp.moveaxis(out, -1, dim)


def _sparsemax_ref(x, dim=-1):
    """Pure-JAX reference mirroring the PyTorch code (sort + cumsum)."""
    xm = jnp.moveaxis(x, dim, -1)
    shp = xm.shape
    z = xm.reshape(-1, shp[-1]).astype(jnp.float32)
    z = z - jnp.max(z, axis=1, keepdims=True)
    zs = -jnp.sort(-z, axis=1)                      # descending
    n = z.shape[1]
    rng = jnp.arange(1, n + 1, dtype=z.dtype)[None, :]
    bound = 1.0 + rng * zs
    cs = jnp.cumsum(zs, axis=1)
    is_gt = (bound > cs).astype(z.dtype)
    k = jnp.max(is_gt * rng, axis=1, keepdims=True)
    taus = (jnp.sum(is_gt * zs, axis=1, keepdims=True) - 1.0) / k
    out = jnp.maximum(jnp.zeros_like(z), z - taus)
    return jnp.moveaxis(out.reshape(shp), -1, dim).astype(x.dtype)


if __name__ == "__main__":
    key = jax.random.PRNGKey(0)
    k1, k2, k3 = jax.random.split(key, 3)

    # Attention-logit shape implied by the module: (B, n_head, T_q, T_k), dim=-1.
    B, H, S, T = 2, 4, 16, 16
    x = 2.0 * jax.random.normal(k1, (B, H, S, T), dtype=jnp.float32)

    f = jax.jit(lambda a: sparsemax(a, -1))
    out = jax.block_until_ready(f(x))
    ref = _sparsemax_ref(x, -1)
    assert out.shape == x.shape
    assert jnp.allclose(out, ref, atol=1e-5, rtol=1e-5), float(
        jnp.max(jnp.abs(out - ref)))
    assert jnp.allclose(jnp.sum(out, axis=-1), 1.0, atol=1e-5)
    assert bool(jnp.all(out >= 0.0))

    # Tie-heavy input: validates the k == sum(in_support) simplification.
    x_ties = jnp.round(x)
    out_t = jax.block_until_ready(f(x_ties))
    ref_t = _sparsemax_ref(x_ties, -1)
    assert jnp.allclose(out_t, ref_t, atol=1e-5, rtol=1e-5), float(
        jnp.max(jnp.abs(out_t - ref_t)))

    # Longer rows: exercises the j-tiled pairwise path (unrolled chunks).
    x_mid = 2.0 * jax.random.normal(k2, (4, 8, 256), dtype=jnp.float32)
    out_m = jax.block_until_ready(sparsemax(x_mid, -1))
    assert jnp.allclose(out_m, _sparsemax_ref(x_mid, -1), atol=1e-5, rtol=1e-5)

    # Long rows: exercises the fori_loop j-tiling path.
    x_long = 2.0 * jax.random.normal(k3, (2, 1024), dtype=jnp.float32)
    out_l = jax.block_until_ready(sparsemax(x_long, -1))
    assert jnp.allclose(out_l, _sparsemax_ref(x_long, -1), atol=1e-5, rtol=1e-5)

    print("KERNEL_OK")
</pallas_src>

<mosaic_0001>
module attributes {stable_mosaic.version = 11 : i64} {
  func.func @kernel(%arg0: i32, %arg1: memref<8x128xf32, #tpu.memory_space<vmem>>, %arg2: memref<8x128xf32, #tpu.memory_space<vmem>>) attributes {dimension_semantics = [#tpu.dimension_semantics<parallel>], iteration_bounds = array<i64: 2>, scalar_prefetch = 0 : i64, scratch_operands = 0 : i64, tpu.core_type = #tpu.core_type<tc>, window_params = [{transform_indices = @transform_0, window_bounds = array<i64: 8, 128>}, {transform_indices = @transform_1, window_bounds = array<i64: 8, 128>}]} {
    %c0 = arith.constant 0 : index
    %c0_0 = arith.constant 0 : index
    %0 = vector.load %arg1[%c0, %c0_0] : memref<8x128xf32, #tpu.memory_space<vmem>>, vector<8x128xf32>
    %1 = tpu.iota {dimensions = array<i32: 1>} : vector<8x128xi32>
    %c16_i32 = arith.constant 16 : i32
    %c0_i32 = arith.constant 0 : i32
    %2 = arith.cmpi eq, %c16_i32, %c0_i32 : i32
    %c1_i32 = arith.constant 1 : i32
    %3 = arith.select %2, %c1_i32, %c16_i32 : i32
    %4 = vector.broadcast %3 : i32 to vector<8x128xi32>
    %5 = arith.remsi %1, %4 : vector<8x128xi32>
    %c0_i32_1 = arith.constant 0 : i32
    %6 = vector.broadcast %c0_i32_1 : i32 to vector<8x128xi32>
    %7 = arith.cmpi ne, %5, %6 : vector<8x128xi32>
    %c0_i32_2 = arith.constant 0 : i32
    %8 = vector.broadcast %c0_i32_2 : i32 to vector<8x128xi32>
    %9 = arith.cmpi slt, %5, %8 : vector<8x128xi32>
    %c0_i32_3 = arith.constant 0 : i32
    %10 = arith.cmpi slt, %3, %c0_i32_3 : i32
    %11 = vector.broadcast %10 : i1 to vector<8x128xi1>
    %12 = vector.broadcast %11 : vector<8x128xi1> to vector<8x128xi1>
    %13 = arith.xori %9, %12 : vector<8x128xi1>
    %14 = arith.andi %13, %7 : vector<8x128xi1>
    %15 = vector.broadcast %3 : i32 to vector<8x128xi32>
    %16 = arith.addi %5, %15 : vector<8x128xi32>
    %17 = arith.select %14, %16, %5 : vector<8x128xi1>, vector<8x128xi32>
    %cst = arith.constant 0.000000e+00 : f32
    %18 = vector.broadcast %cst : f32 to vector<8x128xf32>
    %cst_4 = arith.constant 0.000000e+00 : f32
    %19 = vector.broadcast %cst_4 : f32 to vector<8x128xf32>
    %c127_i32 = arith.constant 127 : i32
    %20 = tpu.dynamic_rotate %0 by %c127_i32 dim 1 : vector<8x128xf32>, i32 -> vector<8x128xf32>
    %c15_i32 = arith.constant 15 : i32
    %21 = tpu.dynamic_rotate %0 by %c15_i32 dim 1 : vector<8x128xf32>, i32 -> vector<8x128xf32>
    %c15_i32_5 = arith.constant 15 : i32
    %22 = vector.broadcast %c15_i32_5 : i32 to vector<8x128xi32>
    %23 = arith.cmpi slt, %17, %22 : vector<8x128xi32>
    %24 = arith.select %23, %20, %21 : vector<8x128xi1>, vector<8x128xf32>
    %25 = arith.maximumf %0, %24 : vector<8x128xf32>
    %26 = arith.cmpf ogt, %24, %0 : vector<8x128xf32>
    %cst_6 = arith.constant 1.000000e+00 : f32
    %cst_7 = arith.constant 0.000000e+00 : f32
    %27 = vector.broadcast %cst_6 : f32 to vector<8x128xf32>
    %28 = vector.broadcast %cst_7 : f32 to vector<8x128xf32>
    %29 = arith.select %26, %27, %28 : vector<8x128xi1>, vector<8x128xf32>
    %30 = arith.addf %18, %29 : vector<8x128xf32>
    %cst_8 = arith.constant 0.000000e+00 : f32
    %31 = vector.broadcast %cst_8 : f32 to vector<8x128xf32>
    %32 = arith.select %26, %24, %31 : vector<8x128xi1>, vector<8x128xf32>
    %33 = arith.addf %19, %32 : vector<8x128xf32>
    %c126_i32 = arith.constant 126 : i32
    %34 = tpu.dynamic_rotate %0 by %c126_i32 dim 1 : vector<8x128xf32>, i32 -> vector<8x128xf32>
    %c14_i32 = arith.constant 14 : i32
    %35 = tpu.dynamic_rotate %0 by %c14_i32 dim 1 : vector<8x128xf32>, i32 -> vector<8x128xf32>
    %c14_i32_9 = arith.constant 14 : i32
    %36 = vector.broadcast %c14_i32_9 : i32 to vector<8x128xi32>
    %37 = arith.cmpi slt, %17, %36 : vector<8x128xi32>
    %38 = arith.select %37, %34, %35 : vector<8x128xi1>, vector<8x128xf32>
    %39 = arith.maximumf %25, %38 : vector<8x128xf32>
    %40 = arith.cmpf ogt, %38, %0 : vector<8x128xf32>
    %cst_10 = arith.constant 1.000000e+00 : f32
    %cst_11 = arith.constant 0.000000e+00 : f32
    %41 = vector.broadcast %cst_10 : f32 to vector<8x128xf32>
    %42 = vector.broadcast %cst_11 : f32 to vector<8x128xf32>
    %43 = arith.select %40, %41, %42 : vector<8x128xi1>, vector<8x128xf32>
    %44 = arith.addf %30, %43 : vector<8x128xf32>
    %cst_12 = arith.constant 0.000000e+00 : f32
    %45 = vector.broadcast %cst_12 : f32 to vector<8x128xf32>
    %46 = arith.select %40, %38, %45 : vector<8x128xi1>, vector<8x128xf32>
    %47 = arith.addf %33, %46 : vector<8x128xf32>
    %c125_i32 = arith.constant 125 : i32
    %48 = tpu.dynamic_rotate %0 by %c125_i32 dim 1 : vector<8x128xf32>, i32 -> vector<8x128xf32>
    %c13_i32 = arith.constant 13 : i32
    %49 = tpu.dynamic_rotate %0 by %c13_i32 dim 1 : vector<8x128xf32>, i32 -> vector<8x128xf32>
    %c13_i32_13 = arith.constant 13 : i32
    %50 = vector.broadcast %c13_i32_13 : i32 to vector<8x128xi32>
    %51 = arith.cmpi slt, %17, %50 : vector<8x128xi32>
    %52 = arith.select %51, %48, %49 : vector<8x128xi1>, vector<8x128xf32>
    %53 = arith.maximumf %39, %52 : vector<8x128xf32>
    %54 = arith.cmpf ogt, %52, %0 : vector<8x128xf32>
    %cst_14 = arith.constant 1.000000e+00 : f32
    %cst_15 = arith.constant 0.000000e+00 : f32
    %55 = vector.broadcast %cst_14 : f32 to vector<8x128xf32>
    %56 = vector.broadcast %cst_15 : f32 to vector<8x128xf32>
    %57 = arith.select %54, %55, %56 : vector<8x128xi1>, vector<8x128xf32>
    %58 = arith.addf %44, %57 : vector<8x128xf32>
    %cst_16 = arith.constant 0.000000e+00 : f32
    %59 = vector.broadcast %cst_16 : f32 to vector<8x128xf32>
    %60 = arith.select %54, %52, %59 : vector<8x128xi1>, vector<8x128xf32>
    %61 = arith.addf %47, %60 : vector<8x128xf32>
    %c124_i32 = arith.constant 124 : i32
    %62 = tpu.dynamic_rotate %0 by %c124_i32 dim 1 : vector<8x128xf32>, i32 -> vector<8x128xf32>
    %c12_i32 = arith.constant 12 : i32
    %63 = tpu.dynamic_rotate %0 by %c12_i32 dim 1 : vector<8x128xf32>, i32 -> vector<8x128xf32>
    %c12_i32_17 = arith.constant 12 : i32
    %64 = vector.broadcast %c12_i32_17 : i32 to vector<8x128xi32>
    %65 = arith.cmpi slt, %17, %64 : vector<8x128xi32>
    %66 = arith.select %65, %62, %63 : vector<8x128xi1>, vector<8x128xf32>
    %67 = arith.maximumf %53, %66 : vector<8x128xf32>
    %68 = arith.cmpf ogt, %66, %0 : vector<8x128xf32>
    %cst_18 = arith.constant 1.000000e+00 : f32
    %cst_19 = arith.constant 0.000000e+00 : f32
    %69 = vector.broadcast %cst_18 : f32 to vector<8x128xf32>
    %70 = vector.broadcast %cst_19 : f32 to vector<8x128xf32>
    %71 = arith.select %68, %69, %70 : vector<8x128xi1>, vector<8x128xf32>
    %72 = arith.addf %58, %71 : vector<8x128xf32>
    %cst_20 = arith.constant 0.000000e+00 : f32
    %73 = vector.broadcast %cst_20 : f32 to vector<8x128xf32>
    %74 = arith.select %68, %66, %73 : vector<8x128xi1>, vector<8x128xf32>
    %75 = arith.addf %61, %74 : vector<8x128xf32>
    %c123_i32 = arith.constant 123 : i32
    %76 = tpu.dynamic_rotate %0 by %c123_i32 dim 1 : vector<8x128xf32>, i32 -> vector<8x128xf32>
    %c11_i32 = arith.constant 11 : i32
    %77 = tpu.dynamic_rotate %0 by %c11_i32 dim 1 : vector<8x128xf32>, i32 -> vector<8x128xf32>
    %c11_i32_21 = arith.constant 11 : i32
    %78 = vector.broadcast %c11_i32_21 : i32 to vector<8x128xi32>
    %79 = arith.cmpi slt, %17, %78 : vector<8x128xi32>
    %80 = arith.select %79, %76, %77 : vector<8x128xi1>, vector<8x128xf32>
    %81 = arith.maximumf %67, %80 : vector<8x128xf32>
    %82 = arith.cmpf ogt, %80, %0 : vector<8x128xf32>
    %cst_22 = arith.constant 1.000000e+00 : f32
    %cst_23 = arith.constant 0.000000e+00 : f32
    %83 = vector.broadcast %cst_22 : f32 to vector<8x128xf32>
    %84 = vector.broadcast %cst_23 : f32 to vector<8x128xf32>
    %85 = arith.select %82, %83, %84 : vector<8x128xi1>, vector<8x128xf32>
    %86 = arith.addf %72, %85 : vector<8x128xf32>
    %cst_24 = arith.constant 0.000000e+00 : f32
    %87 = vector.broadcast %cst_24 : f32 to vector<8x128xf32>
    %88 = arith.select %82, %80, %87 : vector<8x128xi1>, vector<8x128xf32>
    %89 = arith.addf %75, %88 : vector<8x128xf32>
    %c122_i32 = arith.constant 122 : i32
    %90 = tpu.dynamic_rotate %0 by %c122_i32 dim 1 : vector<8x128xf32>, i32 -> vector<8x128xf32>
    %c10_i32 = arith.constant 10 : i32
    %91 = tpu.dynamic_rotate %0 by %c10_i32 dim 1 : vector<8x128xf32>, i32 -> vector<8x128xf32>
    %c10_i32_25 = arith.constant 10 : i32
    %92 = vector.broadcast %c10_i32_25 : i32 to vector<8x128xi32>
    %93 = arith.cmpi slt, %17, %92 : vector<8x128xi32>
    %94 = arith.select %93, %90, %91 : vector<8x128xi1>, vector<8x128xf32>
    %95 = arith.maximumf %81, %94 : vector<8x128xf32>
    %96 = arith.cmpf ogt, %94, %0 : vector<8x128xf32>
    %cst_26 = arith.constant 1.000000e+00 : f32
    %cst_27 = arith.constant 0.000000e+00 : f32
    %97 = vector.broadcast %cst_26 : f32 to vector<8x128xf32>
    %98 = vector.broadcast %cst_27 : f32 to vector<8x128xf32>
    %99 = arith.select %96, %97, %98 : vector<8x128xi1>, vector<8x128xf32>
    %100 = arith.addf %86, %99 : vector<8x128xf32>
    %cst_28 = arith.constant 0.000000e+00 : f32
    %101 = vector.broadcast %cst_28 : f32 to vector<8x128xf32>
    %102 = arith.select %96, %94, %101 : vector<8x128xi1>, vector<8x128xf32>
    %103 = arith.addf %89, %102 : vector<8x128xf32>
    %c121_i32 = arith.constant 121 : i32
    %104 = tpu.dynamic_rotate %0 by %c121_i32 dim 1 : vector<8x128xf32>, i32 -> vector<8x128xf32>
    %c9_i32 = arith.constant 9 : i32
    %105 = tpu.dynamic_rotate %0 by %c9_i32 dim 1 : vector<8x128xf32>, i32 -> vector<8x128xf32>
    %c9_i32_29 = arith.constant 9 : i32
    %106 = vector.broadcast %c9_i32_29 : i32 to vector<8x128xi32>
    %107 = arith.cmpi slt, %17, %106 : vector<8x128xi32>
    %108 = arith.select %107, %104, %105 : vector<8x128xi1>, vector<8x128xf32>
    %109 = arith.maximumf %95, %108 : vector<8x128xf32>
    %110 = arith.cmpf ogt, %108, %0 : vector<8x128xf32>
    %cst_30 = arith.constant 1.000000e+00 : f32
    %cst_31 = arith.constant 0.000000e+00 : f32
    %111 = vector.broadcast %cst_30 : f32 to vector<8x128xf32>
    %112 = vector.broadcast %cst_31 : f32 to vector<8x128xf32>
    %113 = arith.select %110, %111, %112 : vector<8x128xi1>, vector<8x128xf32>
    %114 = arith.addf %100, %113 : vector<8x128xf32>
    %cst_32 = arith.constant 0.000000e+00 : f32
    %115 = vector.broadcast %cst_32 : f32 to vector<8x128xf32>
    %116 = arith.select %110, %108, %115 : vector<8x128xi1>, vector<8x128xf32>
    %117 = arith.addf %103, %116 : vector<8x128xf32>
    %c120_i32 = arith.constant 120 : i32
    %118 = tpu.dynamic_rotate %0 by %c120_i32 dim 1 : vector<8x128xf32>, i32 -> vector<8x128xf32>
    %c8_i32 = arith.constant 8 : i32
    %119 = tpu.dynamic_rotate %0 by %c8_i32 dim 1 : vector<8x128xf32>, i32 -> vector<8x128xf32>
    %c8_i32_33 = arith.constant 8 : i32
    %120 = vector.broadcast %c8_i32_33 : i32 to vector<8x128xi32>
    %121 = arith.cmpi slt, %17, %120 : vector<8x128xi32>
    %122 = arith.select %121, %118, %119 : vector<8x128xi1>, vector<8x128xf32>
    %123 = arith.maximumf %109, %122 : vector<8x128xf32>
    %124 = arith.cmpf ogt, %122, %0 : vector<8x128xf32>
    %cst_34 = arith.constant 1.000000e+00 : f32
    %cst_35 = arith.constant 0.000000e+00 : f32
    %125 = vector.broadcast %cst_34 : f32 to vector<8x128xf32>
    %126 = vector.broadcast %cst_35 : f32 to vector<8x128xf32>
    %127 = arith.select %124, %125, %126 : vector<8x128xi1>, vector<8x128xf32>
    %128 = arith.addf %114, %127 : vector<8x128xf32>
    %cst_36 = arith.constant 0.000000e+00 : f32
    %129 = vector.broadcast %cst_36 : f32 to vector<8x128xf32>
    %130 = arith.select %124, %122, %129 : vector<8x128xi1>, vector<8x128xf32>
    %131 = arith.addf %117, %130 : vector<8x128xf32>
    %c119_i32 = arith.constant 119 : i32
    %132 = tpu.dynamic_rotate %0 by %c119_i32 dim 1 : vector<8x128xf32>, i32 -> vector<8x128xf32>
    %c7_i32 = arith.constant 7 : i32
    %133 = tpu.dynamic_rotate %0 by %c7_i32 dim 1 : vector<8x128xf32>, i32 -> vector<8x128xf32>
    %c7_i32_37 = arith.constant 7 : i32
    %134 = vector.broadcast %c7_i32_37 : i32 to vector<8x128xi32>
    %135 = arith.cmpi slt, %17, %134 : vector<8x128xi32>
    %136 = arith.select %135, %132, %133 : vector<8x128xi1>, vector<8x128xf32>
    %137 = arith.maximumf %123, %136 : vector<8x128xf32>
    %138 = arith.cmpf ogt, %136, %0 : vector<8x128xf32>
    %cst_38 = arith.constant 1.000000e+00 : f32
    %cst_39 = arith.constant 0.000000e+00 : f32
    %139 = vector.broadcast %cst_38 : f32 to vector<8x128xf32>
    %140 = vector.broadcast %cst_39 : f32 to vector<8x128xf32>
    %141 = arith.select %138, %139, %140 : vector<8x128xi1>, vector<8x128xf32>
    %142 = arith.addf %128, %141 : vector<8x128xf32>
    %cst_40 = arith.constant 0.000000e+00 : f32
    %143 = vector.broadcast %cst_40 : f32 to vector<8x128xf32>
    %144 = arith.select %138, %136, %143 : vector<8x128xi1>, vector<8x128xf32>
    %145 = arith.addf %131, %144 : vector<8x128xf32>
    %c118_i32 = arith.constant 118 : i32
    %146 = tpu.dynamic_rotate %0 by %c118_i32 dim 1 : vector<8x128xf32>, i32 -> vector<8x128xf32>
    %c6_i32 = arith.constant 6 : i32
    %147 = tpu.dynamic_rotate %0 by %c6_i32 dim 1 : vector<8x128xf32>, i32 -> vector<8x128xf32>
    %c6_i32_41 = arith.constant 6 : i32
    %148 = vector.broadcast %c6_i32_41 : i32 to vector<8x128xi32>
    %149 = arith.cmpi slt, %17, %148 : vector<8x128xi32>
    %150 = arith.select %149, %146, %147 : vector<8x128xi1>, vector<8x128xf32>
    %151 = arith.maximumf %137, %150 : vector<8x128xf32>
    %152 = arith.cmpf ogt, %150, %0 : vector<8x128xf32>
    %cst_42 = arith.constant 1.000000e+00 : f32
    %cst_43 = arith.constant 0.000000e+00 : f32
    %153 = vector.broadcast %cst_42 : f32 to vector<8x128xf32>
    %154 = vector.broadcast %cst_43 : f32 to vector<8x128xf32>
    %155 = arith.select %152, %153, %154 : vector<8x128xi1>, vector<8x128xf32>
    %156 = arith.addf %142, %155 : vector<8x128xf32>
    %cst_44 = arith.constant 0.000000e+00 : f32
    %157 = vector.broadcast %cst_44 : f32 to vector<8x128xf32>
    %158 = arith.select %152, %150, %157 : vector<8x128xi1>, vector<8x128xf32>
    %159 = arith.addf %145, %158 : vector<8x128xf32>
    %c117_i32 = arith.constant 117 : i32
    %160 = tpu.dynamic_rotate %0 by %c117_i32 dim 1 : vector<8x128xf32>, i32 -> vector<8x128xf32>
    %c5_i32 = arith.constant 5 : i32
    %161 = tpu.dynamic_rotate %0 by %c5_i32 dim 1 : vector<8x128xf32>, i32 -> vector<8x128xf32>
    %c5_i32_45 = arith.constant 5 : i32
    %162 = vector.broadcast %c5_i32_45 : i32 to vector<8x128xi32>
    %163 = arith.cmpi slt, %17, %162 : vector<8x128xi32>
    %164 = arith.select %163, %160, %161 : vector<8x128xi1>, vector<8x128xf32>
    %165 = arith.maximumf %151, %164 : vector<8x128xf32>
    %166 = arith.cmpf ogt, %164, %0 : vector<8x128xf32>
    %cst_46 = arith.constant 1.000000e+00 : f32
    %cst_47 = arith.constant 0.000000e+00 : f32
    %167 = vector.broadcast %cst_46 : f32 to vector<8x128xf32>
    %168 = vector.broadcast %cst_47 : f32 to vector<8x128xf32>
    %169 = arith.select %166, %167, %168 : vector<8x128xi1>, vector<8x128xf32>
    %170 = arith.addf %156, %169 : vector<8x128xf32>
    %cst_48 = arith.constant 0.000000e+00 : f32
    %171 = vector.broadcast %cst_48 : f32 to vector<8x128xf32>
    %172 = arith.select %166, %164, %171 : vector<8x128xi1>, vector<8x128xf32>
    %173 = arith.addf %159, %172 : vector<8x128xf32>
    %c116_i32 = arith.constant 116 : i32
    %174 = tpu.dynamic_rotate %0 by %c116_i32 dim 1 : vector<8x128xf32>, i32 -> vector<8x128xf32>
    %c4_i32 = arith.constant 4 : i32
    %175 = tpu.dynamic_rotate %0 by %c4_i32 dim 1 : vector<8x128xf32>, i32 -> vector<8x128xf32>
    %c4_i32_49 = arith.constant 4 : i32
    %176 = vector.broadcast %c4_i32_49 : i32 to vector<8x128xi32>
    %177 = arith.cmpi slt, %17, %176 : vector<8x128xi32>
    %178 = arith.select %177, %174, %175 : vector<8x128xi1>, vector<8x128xf32>
    %179 = arith.maximumf %165, %178 : vector<8x128xf32>
    %180 = arith.cmpf ogt, %178, %0 : vector<8x128xf32>
    %cst_50 = arith.constant 1.000000e+00 : f32
    %cst_51 = arith.constant 0.000000e+00 : f32
    %181 = vector.broadcast %cst_50 : f32 to vector<8x128xf32>
    %182 = vector.broadcast %cst_51 : f32 to vector<8x128xf32>
    %183 = arith.select %180, %181, %182 : vector<8x128xi1>, vector<8x128xf32>
    %184 = arith.addf %170, %183 : vector<8x128xf32>
    %cst_52 = arith.constant 0.000000e+00 : f32
    %185 = vector.broadcast %cst_52 : f32 to vector<8x128xf32>
    %186 = arith.select %180, %178, %185 : vector<8x128xi1>, vector<8x128xf32>
    %187 = arith.addf %173, %186 : vector<8x128xf32>
    %c115_i32 = arith.constant 115 : i32
    %188 = tpu.dynamic_rotate %0 by %c115_i32 dim 1 : vector<8x128xf32>, i32 -> vector<8x128xf32>
    %c3_i32 = arith.constant 3 : i32
    %189 = tpu.dynamic_rotate %0 by %c3_i32 dim 1 : vector<8x128xf32>, i32 -> vector<8x128xf32>
    %c3_i32_53 = arith.constant 3 : i32
    %190 = vector.broadcast %c3_i32_53 : i32 to vector<8x128xi32>
    %191 = arith.cmpi slt, %17, %190 : vector<8x128xi32>
    %192 = arith.select %191, %188, %189 : vector<8x128xi1>, vector<8x128xf32>
    %193 = arith.maximumf %179, %192 : vector<8x128xf32>
    %194 = arith.cmpf ogt, %192, %0 : vector<8x128xf32>
    %cst_54 = arith.constant 1.000000e+00 : f32
    %cst_55 = arith.constant 0.000000e+00 : f32
    %195 = vector.broadcast %cst_54 : f32 to vector<8x128xf32>
    %196 = vector.broadcast %cst_55 : f32 to vector<8x128xf32>
    %197 = arith.select %194, %195, %196 : vector<8x128xi1>, vector<8x128xf32>
    %198 = arith.addf %184, %197 : vector<8x128xf32>
    %cst_56 = arith.constant 0.000000e+00 : f32
    %199 = vector.broadcast %cst_56 : f32 to vector<8x128xf32>
    %200 = arith.select %194, %192, %199 : vector<8x128xi1>, vector<8x128xf32>
    %201 = arith.addf %187, %200 : vector<8x128xf32>
    %c114_i32 = arith.constant 114 : i32
    %202 = tpu.dynamic_rotate %0 by %c114_i32 dim 1 : vector<8x128xf32>, i32 -> vector<8x128xf32>
    %c2_i32 = arith.constant 2 : i32
    %203 = tpu.dynamic_rotate %0 by %c2_i32 dim 1 : vector<8x128xf32>, i32 -> vector<8x128xf32>
    %c2_i32_57 = arith.constant 2 : i32
    %204 = vector.broadcast %c2_i32_57 : i32 to vector<8x128xi32>
    %205 = arith.cmpi slt, %17, %204 : vector<8x128xi32>
    %206 = arith.select %205, %202, %203 : vector<8x128xi1>, vector<8x128xf32>
    %207 = arith.maximumf %193, %206 : vector<8x128xf32>
    %208 = arith.cmpf ogt, %206, %0 : vector<8x128xf32>
    %cst_58 = arith.constant 1.000000e+00 : f32
    %cst_59 = arith.constant 0.000000e+00 : f32
    %209 = vector.broadcast %cst_58 : f32 to vector<8x128xf32>
    %210 = vector.broadcast %cst_59 : f32 to vector<8x128xf32>
    %211 = arith.select %208, %209, %210 : vector<8x128xi1>, vector<8x128xf32>
    %212 = arith.addf %198, %211 : vector<8x128xf32>
    %cst_60 = arith.constant 0.000000e+00 : f32
    %213 = vector.broadcast %cst_60 : f32 to vector<8x128xf32>
    %214 = arith.select %208, %206, %213 : vector<8x128xi1>, vector<8x128xf32>
    %215 = arith.addf %201, %214 : vector<8x128xf32>
    %c113_i32 = arith.constant 113 : i32
    %216 = tpu.dynamic_rotate %0 by %c113_i32 dim 1 : vector<8x128xf32>, i32 -> vector<8x128xf32>
    %c1_i32_61 = arith.constant 1 : i32
    %217 = tpu.dynamic_rotate %0 by %c1_i32_61 dim 1 : vector<8x128xf32>, i32 -> vector<8x128xf32>
    %c1_i32_62 = arith.constant 1 : i32
    %218 = vector.broadcast %c1_i32_62 : i32 to vector<8x128xi32>
    %219 = arith.cmpi slt, %17, %218 : vector<8x128xi32>
    %220 = arith.select %219, %216, %217 : vector<8x128xi1>, vector<8x128xf32>
    %221 = arith.maximumf %207, %220 : vector<8x128xf32>
    %222 = arith.cmpf ogt, %220, %0 : vector<8x128xf32>
    %cst_63 = arith.constant 1.000000e+00 : f32
    %cst_64 = arith.constant 0.000000e+00 : f32
    %223 = vector.broadcast %cst_63 : f32 to vector<8x128xf32>
    %224 = vector.broadcast %cst_64 : f32 to vector<8x128xf32>
    %225 = arith.select %222, %223, %224 : vector<8x128xi1>, vector<8x128xf32>
    %226 = arith.addf %212, %225 : vector<8x128xf32>
    %cst_65 = arith.constant 0.000000e+00 : f32
    %227 = vector.broadcast %cst_65 : f32 to vector<8x128xf32>
    %228 = arith.select %222, %220, %227 : vector<8x128xi1>, vector<8x128xf32>
    %229 = arith.addf %215, %228 : vector<8x128xf32>
    %230 = arith.subf %0, %221 : vector<8x128xf32>
    %231 = arith.mulf %226, %221 : vector<8x128xf32>
    %232 = arith.subf %229, %231 : vector<8x128xf32>
    %233 = arith.mulf %226, %230 : vector<8x128xf32>
    %cst_66 = arith.constant 1.000000e+00 : f32
    %234 = vector.broadcast %cst_66 : f32 to vector<8x128xf32>
    %235 = arith.addf %234, %233 : vector<8x128xf32>
    %236 = arith.cmpf ogt, %235, %232 : vector<8x128xf32>
    %cst_67 = arith.constant 1.000000e+00 : f32
    %cst_68 = arith.constant 0.000000e+00 : f32
    %237 = vector.broadcast %cst_67 : f32 to vector<8x128xf32>
    %238 = vector.broadcast %cst_68 : f32 to vector<8x128xf32>
    %239 = arith.select %236, %237, %238 : vector<8x128xi1>, vector<8x128xf32>
    %cst_69 = arith.constant 0.000000e+00 : f32
    %240 = vector.broadcast %cst_69 : f32 to vector<8x128xf32>
    %241 = arith.select %236, %230, %240 : vector<8x128xi1>, vector<8x128xf32>
    %c127_i32_70 = arith.constant 127 : i32
    %242 = tpu.dynamic_rotate %239 by %c127_i32_70 dim 1 : vector<8x128xf32>, i32 -> vector<8x128xf32>
    %c15_i32_71 = arith.constant 15 : i32
    %243 = tpu.dynamic_rotate %239 by %c15_i32_71 dim 1 : vector<8x128xf32>, i32 -> vector<8x128xf32>
    %c15_i32_72 = arith.constant 15 : i32
    %244 = vector.broadcast %c15_i32_72 : i32 to vector<8x128xi32>
    %245 = arith.cmpi slt, %17, %244 : vector<8x128xi32>
    %246 = arith.select %245, %242, %243 : vector<8x128xi1>, vector<8x128xf32>
    %247 = arith.addf %239, %246 : vector<8x128xf32>
    %c127_i32_73 = arith.constant 127 : i32
    %248 = tpu.dynamic_rotate %241 by %c127_i32_73 dim 1 : vector<8x128xf32>, i32 -> vector<8x128xf32>
    %c15_i32_74 = arith.constant 15 : i32
    %249 = tpu.dynamic_rotate %241 by %c15_i32_74 dim 1 : vector<8x128xf32>, i32 -> vector<8x128xf32>
    %c15_i32_75 = arith.constant 15 : i32
    %250 = vector.broadcast %c15_i32_75 : i32 to vector<8x128xi32>
    %251 = arith.cmpi slt, %17, %250 : vector<8x128xi32>
    %252 = arith.select %251, %248, %249 : vector<8x128xi1>, vector<8x128xf32>
    %253 = arith.addf %241, %252 : vector<8x128xf32>
    %c126_i32_76 = arith.constant 126 : i32
    %254 = tpu.dynamic_rotate %247 by %c126_i32_76 dim 1 : vector<8x128xf32>, i32 -> vector<8x128xf32>
    %c14_i32_77 = arith.constant 14 : i32
    %255 = tpu.dynamic_rotate %247 by %c14_i32_77 dim 1 : vector<8x128xf32>, i32 -> vector<8x128xf32>
    %c14_i32_78 = arith.constant 14 : i32
    %256 = vector.broadcast %c14_i32_78 : i32 to vector<8x128xi32>
    %257 = arith.cmpi slt, %17, %256 : vector<8x128xi32>
    %258 = arith.select %257, %254, %255 : vector<8x128xi1>, vector<8x128xf32>
    %259 = arith.addf %247, %258 : vector<8x128xf32>
    %c126_i32_79 = arith.constant 126 : i32
    %260 = tpu.dynamic_rotate %253 by %c126_i32_79 dim 1 : vector<8x128xf32>, i32 -> vector<8x128xf32>
    %c14_i32_80 = arith.constant 14 : i32
    %261 = tpu.dynamic_rotate %253 by %c14_i32_80 dim 1 : vector<8x128xf32>, i32 -> vector<8x128xf32>
    %c14_i32_81 = arith.constant 14 : i32
    %262 = vector.broadcast %c14_i32_81 : i32 to vector<8x128xi32>
    %263 = arith.cmpi slt, %17, %262 : vector<8x128xi32>
    %264 = arith.select %263, %260, %261 : vector<8x128xi1>, vector<8x128xf32>
    %265 = arith.addf %253, %264 : vector<8x128xf32>
    %c124_i32_82 = arith.constant 124 : i32
    %266 = tpu.dynamic_rotate %259 by %c124_i32_82 dim 1 : vector<8x128xf32>, i32 -> vector<8x128xf32>
    %c12_i32_83 = arith.constant 12 : i32
    %267 = tpu.dynamic_rotate %259 by %c12_i32_83 dim 1 : vector<8x128xf32>, i32 -> vector<8x128xf32>
    %c12_i32_84 = arith.constant 12 : i32
    %268 = vector.broadcast %c12_i32_84 : i32 to vector<8x128xi32>
    %269 = arith.cmpi slt, %17, %268 : vector<8x128xi32>
    %270 = arith.select %269, %266, %267 : vector<8x128xi1>, vector<8x128xf32>
    %271 = arith.addf %259, %270 : vector<8x128xf32>
    %c124_i32_85 = arith.constant 124 : i32
    %272 = tpu.dynamic_rotate %265 by %c124_i32_85 dim 1 : vector<8x128xf32>, i32 -> vector<8x128xf32>
    %c12_i32_86 = arith.constant 12 : i32
    %273 = tpu.dynamic_rotate %265 by %c12_i32_86 dim 1 : vector<8x128xf32>, i32 -> vector<8x128xf32>
    %c12_i32_87 = arith.constant 12 : i32
    %274 = vector.broadcast %c12_i32_87 : i32 to vector<8x128xi32>
    %275 = arith.cmpi slt, %17, %274 : vector<8x128xi32>
    %276 = arith.select %275, %272, %273 : vector<8x128xi1>, vector<8x128xf32>
    %277 = arith.addf %265, %276 : vector<8x128xf32>
    %c120_i32_88 = arith.constant 120 : i32
    %278 = tpu.dynamic_rotate %271 by %c120_i32_88 dim 1 : vector<8x128xf32>, i32 -> vector<8x128xf32>
    %c8_i32_89 = arith.constant 8 : i32
    %279 = tpu.dynamic_rotate %271 by %c8_i32_89 dim 1 : vector<8x128xf32>, i32 -> vector<8x128xf32>
    %c8_i32_90 = arith.constant 8 : i32
    %280 = vector.broadcast %c8_i32_90 : i32 to vector<8x128xi32>
    %281 = arith.cmpi slt, %17, %280 : vector<8x128xi32>
    %282 = arith.select %281, %278, %279 : vector<8x128xi1>, vector<8x128xf32>
    %283 = arith.addf %271, %282 : vector<8x128xf32>
    %c120_i32_91 = arith.constant 120 : i32
    %284 = tpu.dynamic_rotate %277 by %c120_i32_91 dim 1 : vector<8x128xf32>, i32 -> vector<8x128xf32>
    %c8_i32_92 = arith.constant 8 : i32
    %285 = tpu.dynamic_rotate %277 by %c8_i32_92 dim 1 : vector<8x128xf32>, i32 -> vector<8x128xf32>
    %c8_i32_93 = arith.constant 8 : i32
    %286 = vector.broadcast %c8_i32_93 : i32 to vector<8x128xi32>
    %287 = arith.cmpi slt, %17, %286 : vector<8x128xi32>
    %288 = arith.select %287, %284, %285 : vector<8x128xi1>, vector<8x128xf32>
    %289 = arith.addf %277, %288 : vector<8x128xf32>
    %cst_94 = arith.constant 1.000000e+00 : f32
    %290 = vector.broadcast %cst_94 : f32 to vector<8x128xf32>
    %291 = arith.subf %289, %290 : vector<8x128xf32>
    %292 = arith.divf %291, %283 : vector<8x128xf32>
    %293 = arith.subf %230, %292 : vector<8x128xf32>
    %cst_95 = arith.constant 0.000000e+00 : f32
    %294 = vector.broadcast %cst_95 : f32 to vector<8x128xf32>
    %295 = arith.maximumf %293, %294 : vector<8x128xf32>
    %c0_96 = arith.constant 0 : index
    %c0_97 = arith.constant 0 : index
    %296 = vector.load %arg2[%c0_96, %c0_97] : memref<8x128xf32, #tpu.memory_space<vmem>>, vector<8x128xf32>
    tpu.vector_store %arg2[%c0_96, %c0_97], %295 {strides = array<i32>} : memref<8x128xf32, #tpu.memory_space<vmem>>, vector<8x128xf32>,
    return
  }
  func.func @transform_0(%arg0: i32) -> (i32, i32) {
    %c0_i32 = arith.constant 0 : i32
    %c0_i32_0 = arith.constant 0 : i32
    return %arg0, %c0_i32 : i32, i32
  }
  func.func @transform_1(%arg0: i32) -> (i32, i32) {
    %c0_i32 = arith.constant 0 : i32
    %c0_i32_0 = arith.constant 0 : i32
    return %arg0, %c0_i32 : i32, i32
  }
}

</mosaic_0001>

<llo_original>
// kernel: _lambda_.1
$region0: #{_lambda_.1}
  #allocation0 [shape = 'u32[]', space=smem, size = 0x4, offset = 0x4, fixed_abs, tag = 'smem constant byte address 0x4 - core index']
  #allocation1 [shape = 'u32[144,128]{1,0:T(1,128)}', space=vmem, size = 0x12000, scoped, tag = 'internal scratch']
  %s0 = inlined_call_operand.vmem [shape: f32[16,128], index: 0, kind: input, shape index: {}]
  %s1 = inlined_call_operand.vmem [shape: f32[16,128], index: 1, kind: output, shape index: {}]
  %s2 = sld [smem:[#allocation0]]
  $region37: #{_lambda_.1} parent=0
    _
  %s4 = ssub.s32 1, %s2
  %s5 = scalar_select 0, %s4, %s2
  loop: start=0, step=1, limit=4
  $region2: #{_lambda_.1} parent=0 // loop_pre_header
    _
  $region3: #{_lambda_.1} parent=0 // loop_header
    %s7 = sphi 0, %s11
    %p8 = scmp.ge.s32.totalorder %s7, 4
    %s17 = sphi 0, %s19
    %s20 = sphi 0, %s17
    %s21 = sphi 0, %s20
    %s37 = sphi 0, %s21
    %s43 = sphi 0, %s45
    %s46 = sphi 0, %s43
    %s47 = sphi 0, %s46
    %s63 = sphi 0, %s47
  $region4: #{_lambda_.1} parent=0 // loop_header_branch
    %10 = sbr.rel (%p8) target = $region8
  $region5: #{_lambda_.1} parent=0 // loop_body
    %s12 = ssub.s32 %s7, 1
    %s13 = ssub.s32 %s7, 2
    %s14 = sadd.s32 %s7, 1
    %s15 = ssub.s32 %s7, %s14
    %p16 = scmp.eq.s32.totalorder %s15, 0
    %s18 = sadd.s32 %s17, 1
    %s19 = scalar_select %p16, %s17, %s18
    %p22 = pneg %p16
    %p23 = scmp.eq.s32.totalorder %s7, 1
    %p24 = por %p22, %p23
    %p25 = scmp.ne.s32.totalorder %s17, %s20
    %p26 = scmp.eq.s32.totalorder %s7, 0
    %p27 = por %p25, %p26
    %p28 = scmp.ne.s32.totalorder %s17, %s20
    %p29 = scmp.eq.s32.totalorder %s12, 1
    %p30 = por %p28, %p29
    %p31 = scmp.ne.s32.totalorder %s20, %s21
    %p32 = scmp.eq.s32.totalorder %s12, 0
    %p33 = por %p31, %p32
    %p34 = scmp.ne.s32.totalorder %s20, %s21
    %p35 = scmp.eq.s32.totalorder %s13, 1
    %p36 = por %p34, %p35
    %p38 = scmp.ne.s32.totalorder %s21, %s37
    %p39 = scmp.eq.s32.totalorder %s13, 0
    %p40 = por %p38, %p39
    %s41 = ssub.s32 %s7, %s14
    %p42 = scmp.eq.s32.totalorder %s41, 0
    %s44 = sadd.s32 %s43, 1
    %s45 = scalar_select %p42, %s43, %s44
    %p48 = pneg %p42
    %p49 = scmp.eq.s32.totalorder %s7, 1
    %p50 = por %p48, %p49
    %p51 = scmp.ne.s32.totalorder %s43, %s46
    %p52 = scmp.eq.s32.totalorder %s7, 0
    %p53 = por %p51, %p52
    %p54 = scmp.ne.s32.totalorder %s43, %s46
    %p55 = scmp.eq.s32.totalorder %s12, 1
    %p56 = por %p54, %p55
    %p57 = scmp.ne.s32.totalorder %s46, %s47
    %p58 = scmp.eq.s32.totalorder %s12, 0
    %p59 = por %p57, %p58
    %p60 = scmp.ne.s32.totalorder %s46, %s47
    %p61 = scmp.eq.s32.totalorder %s13, 1
    %p62 = por %p60, %p61
    %p64 = scmp.ne.s32.totalorder %s47, %s63
    %p65 = scmp.eq.s32.totalorder %s13, 0
    %p66 = por %p64, %p65
    %p67 = scmp.le.s32.totalorder 1, %s7
    %p68 = scmp.lt.s32.totalorder %s7, 3
    %p69 = pnand %p67, %p68
    %p70 = pneg %p69
    // Predicated region
    $region9: #{_lambda_.1} parent=5 // pred_check
      _
    $region10: #{_lambda_.1} parent=5 // pred_check_branch
      %72 = sbr.rel (%p69) target = $region12
    $region11: #{_lambda_.1} parent=5 // pred_region
      %s73 = ssub.s32 %s7, 1
    $region12: #{_lambda_.1} parent=5 // pred_fallthru
      _
    %p74 = scmp.lt.s32.totalorder %s7, 2
    // Predicated region
    $region13: #{_lambda_.1} parent=5 // pred_check
      %p75 = pneg %p74
    $region14: #{_lambda_.1} parent=5 // pred_check_branch
      %77 = sbr.rel (%p75) target = $region16
    $region15: #{_lambda_.1} parent=5 // pred_region
      // Predicated region
      $region17: #{_lambda_.1} parent=15 // pred_check
        %p78 = pneg %p27
      $region18: #{_lambda_.1} parent=15 // pred_check_branch
        %80 = sbr.rel (%p78) target = $region20
      $region19: #{_lambda_.1} parent=15 // pred_region
        %p81 = scmp.lt.s32.totalorder %s7, 1
        %s82 = scalar_select %p81, %s7, 1
        %s83 = smul.addr %s82, 8
        %s84 = scalar_lea.vmem %s0, %s83
      $region20: #{_lambda_.1} parent=15 // pred_fallthru
        _
    $region16: #{_lambda_.1} parent=5 // pred_fallthru
      _
    %p85 = scmp.le.s32.totalorder 1, %s7
    %p86 = scmp.lt.s32.totalorder %s7, 3
    %p87 = pnand %p85, %p86
    %p88 = pneg %p87
    // Predicated region
    $region21: #{_lambda_.1} parent=5 // pred_check
      _
    $region22: #{_lambda_.1} parent=5 // pred_check_branch
      %90 = sbr.rel (%p87) target = $region24
    $region23: #{_lambda_.1} parent=5 // pred_region
      %s91 = ssub.s32 %s7, 1
      %p92 = scmp.lt.s32.totalorder %s12, 1
      %s93 = scalar_select %p92, %s12, 1
      %s94 = smul.addr %s93, 8
      %s95 = scalar_lea.vmem %s0, %s94
      %p96 = pneg %p33
      %p97 = pneg %p30
      %p98 = pneg %p59
      %p99 = pneg %p56
      %p100 = scmp.lt.s32.totalorder %s12, 1
      %s101 = scalar_select %p100, %s12, 1
      %s102 = smul.addr %s101, 8
      %s103 = scalar_lea.vmem %s1, %s102
      %p104 = scmp.lt.s32.totalorder %s12, 1
      %s105 = scalar_select %p104, %s12, 1
      %s106 = smul.addr %s105, 8
      %s107 = scalar_lea.vmem %s0, %s106
      %p108 = scmp.lt.s32.totalorder %s12, 1
      %s109 = scalar_select %p108, %s12, 1
      %s110 = smul.addr %s109, 8
      %s111 = scalar_lea.vmem %s1, %s110
      %v112 = vld [vmem:[%s107] sm:$0xff]
      %v113 = vlaneseq
      %v114 = vand.u32 %v113, 127
      %vm115 = vcmp.lt.s32.totalorder %v114, 0
      %v116 = vsub.s32 0, %v114
      %v117 = vsel %vm115, %v116, %v114
      %v118 = vshrl.u32 %v117, 4
      %v119 = vand.u32 %v117, 15
      %v120 = vsub.s32 0, %v119
      %v121 = vsel %vm115, %v120, %v119
      %vm122 = vcmp.ne.s32.totalorder %v121, 0
      %vm123 = vcmp.lt.s32.totalorder %v121, 0
      %vm124 = vmand %vm123, %vm122
      %v125 = vadd.s32 %v121, 16
      %v126 = vsel %vm124, %v125, %v121
      %127 = vrot.lane.b32.xlu0 %v112, 127
      %v128 = vpop.permute.xlu0 %127
      %129 = vrot.lane.b32.xlu0 %v112, 15
      %v130 = vpop.permute.xlu0 %129
      %vm131 = vcmp.lt.s32.totalorder %v126, 15
      %v132 = vsel %vm131, %v128, %v130
      %v133 = vmax.f32 %v112, %v132
      %vm134 = vcmp.gt.f32.partialorder %v132, %v112
      %v135 = vsel %vm134, 1.0, 0.0
      %v136 = vadd.f32 %v135, 0.0
      %v137 = vsel %vm134, %v132, 0.0
      %v138 = vadd.f32 %v137, 0.0
      %139 = vrot.lane.b32.xlu0 %v112, 126
      %v140 = vpop.permute.xlu0 %139
      %141 = vrot.lane.b32.xlu0 %v112, 14
      %v142 = vpop.permute.xlu0 %141
      %vm143 = vcmp.lt.s32.totalorder %v126, 14
      %v144 = vsel %vm143, %v140, %v142
      %v145 = vmax.f32 %v133, %v144
      %vm146 = vcmp.gt.f32.partialorder %v144, %v112
      %v147 = vsel %vm146, 1.0, 0.0
      %v148 = vadd.f32 %v136, %v147
      %v149 = vsel %vm146, %v144, 0.0
      %v150 = vadd.f32 %v138, %v149
      %151 = vrot.lane.b32.xlu0 %v112, 125
      %v152 = vpop.permute.xlu0 %151
      %153 = vrot.lane.b32.xlu0 %v112, 13
      %v154 = vpop.permute.xlu0 %153
      %vm155 = vcmp.lt.s32.totalorder %v126, 13
      %v156 = vsel %vm155, %v152, %v154
      %v157 = vmax.f32 %v145, %v156
      %vm158 = vcmp.gt.f32.partialorder %v156, %v112
      %v159 = vsel %vm158, 1.0, 0.0
      %v160 = vadd.f32 %v148, %v159
      %v161 = vsel %vm158, %v156, 0.0
      %v162 = vadd.f32 %v150, %v161
      %163 = vrot.lane.b32.xlu0 %v112, 124
      %v164 = vpop.permute.xlu0 %163
      %165 = vrot.lane.b32.xlu0 %v112, 12
      %v166 = vpop.permute.xlu0 %165
      %vm167 = vcmp.lt.s32.totalorder %v126, 12
      %v168 = vsel %vm167, %v164, %v166
      %v169 = vmax.f32 %v157, %v168
      %vm170 = vcmp.gt.f32.partialorder %v168, %v112
      %v171 = vsel %vm170, 1.0, 0.0
      %v172 = vadd.f32 %v160, %v171
      %v173 = vsel %vm170, %v168, 0.0
      %v174 = vadd.f32 %v162, %v173
      %175 = vrot.lane.b32.xlu0 %v112, 123
      %v176 = vpop.permute.xlu0 %175
      %177 = vrot.lane.b32.xlu0 %v112, 11
      %v178 = vpop.permute.xlu0 %177
      %vm179 = vcmp.lt.s32.totalorder %v126, 11
      %v180 = vsel %vm179, %v176, %v178
      %v181 = vmax.f32 %v169, %v180
      %vm182 = vcmp.gt.f32.partialorder %v180, %v112
      %v183 = vsel %vm182, 1.0, 0.0
      %v184 = vadd.f32 %v172, %v183
      %v185 = vsel %vm182, %v180, 0.0
      %v186 = vadd.f32 %v174, %v185
      %187 = vrot.lane.b32.xlu0 %v112, 122
      %v188 = vpop.permute.xlu0 %187
      %189 = vrot.lane.b32.xlu0 %v112, 10
      %v190 = vpop.permute.xlu0 %189
      %vm191 = vcmp.lt.s32.totalorder %v126, 10
      %v192 = vsel %vm191, %v188, %v190
      %v193 = vmax.f32 %v181, %v192
      %vm194 = vcmp.gt.f32.partialorder %v192, %v112
      %v195 = vsel %vm194, 1.0, 0.0
      %v196 = vadd.f32 %v184, %v195
      %v197 = vsel %vm194, %v192, 0.0
      %v198 = vadd.f32 %v186, %v197
      %199 = vrot.lane.b32.xlu0 %v112, 121
      %v200 = vpop.permute.xlu0 %199
      %201 = vrot.lane.b32.xlu0 %v112, 9
      %v202 = vpop.permute.xlu0 %201
      %vm203 = vcmp.lt.s32.totalorder %v126, 9
      %v204 = vsel %vm203, %v200, %v202
      %v205 = vmax.f32 %v193, %v204
      %vm206 = vcmp.gt.f32.partialorder %v204, %v112
      %v207 = vsel %vm206, 1.0, 0.0
      %v208 = vadd.f32 %v196, %v207
      %v209 = vsel %vm206, %v204, 0.0
      %v210 = vadd.f32 %v198, %v209
      %211 = vrot.lane.b32.xlu0 %v112, 120
      %v212 = vpop.permute.xlu0 %211
      %213 = vrot.lane.b32.xlu0 %v112, 8
      %v214 = vpop.permute.xlu0 %213
      %vm215 = vcmp.lt.s32.totalorder %v126, 8
      %v216 = vsel %vm215, %v212, %v214
      %v217 = vmax.f32 %v205, %v216
      %vm218 = vcmp.gt.f32.partialorder %v216, %v112
      %v219 = vsel %vm218, 1.0, 0.0
      %v220 = vadd.f32 %v208, %v219
      %v221 = vsel %vm218, %v216, 0.0
      %v222 = vadd.f32 %v210, %v221
      %223 = vrot.lane.b32.xlu0 %v112, 119
      %v224 = vpop.permute.xlu0 %223
      %225 = vrot.lane.b32.xlu0 %v112, 7
      %v226 = vpop.permute.xlu0 %225
      %vm227 = vcmp.lt.s32.totalorder %v126, 7
      %v228 = vsel %vm227, %v224, %v226
      %v229 = vmax.f32 %v217, %v228
      %vm230 = vcmp.gt.f32.partialorder %v228, %v112
      %v231 = vsel %vm230, 1.0, 0.0
      %v232 = vadd.f32 %v220, %v231
      %v233 = vsel %vm230, %v228, 0.0
      %v234 = vadd.f32 %v222, %v233
      %235 = vrot.lane.b32.xlu0 %v112, 118
      %v236 = vpop.permute.xlu0 %235
      %237 = vrot.lane.b32.xlu0 %v112, 6
      %v238 = vpop.permute.xlu0 %237
      %vm239 = vcmp.lt.s32.totalorder %v126, 6
      %v240 = vsel %vm239, %v236, %v238
      %v241 = vmax.f32 %v229, %v240
      %vm242 = vcmp.gt.f32.partialorder %v240, %v112
      %v243 = vsel %vm242, 1.0, 0.0
      %v244 = vadd.f32 %v232, %v243
      %v245 = vsel %vm242, %v240, 0.0
      %v246 = vadd.f32 %v234, %v245
      %247 = vrot.lane.b32.xlu0 %v112, 117
      %v248 = vpop.permute.xlu0 %247
      %249 = vrot.lane.b32.xlu0 %v112, 5
      %v250 = vpop.permute.xlu0 %249
      %vm251 = vcmp.lt.s32.totalorder %v126, 5
      %v252 = vsel %vm251, %v248, %v250
      %v253 = vmax.f32 %v241, %v252
      %vm254 = vcmp.gt.f32.partialorder %v252, %v112
      %v255 = vsel %vm254, 1.0, 0.0
      %v256 = vadd.f32 %v244, %v255
      %v257 = vsel %vm254, %v252, 0.0
      %v258 = vadd.f32 %v246, %v257
      %259 = vrot.lane.b32.xlu0 %v112, 116
      %v260 = vpop.permute.xlu0 %259
      %261 = vrot.lane.b32.xlu0 %v112, 4
      %v262 = vpop.permute.xlu0 %261
      %vm263 = vcmp.lt.s32.totalorder %v126, 4
      %v264 = vsel %vm263, %v260, %v262
      %v265 = vmax.f32 %v253, %v264
      %vm266 = vcmp.gt.f32.partialorder %v264, %v112
      %v267 = vsel %vm266, 1.0, 0.0
      %v268 = vadd.f32 %v256, %v267
      %v269 = vsel %vm266, %v264, 0.0
      %v270 = vadd.f32 %v258, %v269
      %271 = vrot.lane.b32.xlu0 %v112, 115
      %v272 = vpop.permute.xlu0 %271
      %273 = vrot.lane.b32.xlu0 %v112, 3
      %v274 = vpop.permute.xlu0 %273
      %vm275 = vcmp.lt.s32.totalorder %v126, 3
      %v276 = vsel %vm275, %v272, %v274
      %v277 = vmax.f32 %v265, %v276
      %vm278 = vcmp.gt.f32.partialorder %v276, %v112
      %v279 = vsel %vm278, 1.0, 0.0
      %v280 = vadd.f32 %v268, %v279
      %v281 = vsel %vm278, %v276, 0.0
      %v282 = vadd.f32 %v270, %v281
      %283 = vrot.lane.b32.xlu0 %v112, 114
      %v284 = vpop.permute.xlu0 %283
      %285 = vrot.lane.b32.xlu0 %v112, 2
      %v286 = vpop.permute.xlu0 %285
      %vm287 = vcmp.lt.s32.totalorder %v126, 2
      %v288 = vsel %vm287, %v284, %v286
      %v289 = vmax.f32 %v277, %v288
      %vm290 = vcmp.gt.f32.partialorder %v288, %v112
      %v291 = vsel %vm290, 1.0, 0.0
      %v292 = vadd.f32 %v280, %v291
      %v293 = vsel %vm290, %v288, 0.0
      %v294 = vadd.f32 %v282, %v293
      %295 = vrot.lane.b32.xlu0 %v112, 113
      %v296 = vpop.permute.xlu0 %295
      %297 = vrot.lane.b32.xlu0 %v112, 1
      %v298 = vpop.permute.xlu0 %297
      %vm299 = vcmp.lt.s32.totalorder %v126, 1
      %v300 = vsel %vm299, %v296, %v298
      %v301 = vmax.f32 %v289, %v300
      %vm302 = vcmp.gt.f32.partialorder %v300, %v112
      %v303 = vsel %vm302, 1.0, 0.0
      %v304 = vadd.f32 %v292, %v303
      %v305 = vsel %vm302, %v300, 0.0
      %v306 = vadd.f32 %v294, %v305
      %v307 = vsub.f32 %v112, %v301
      %v308 = vmul.f32 %v304, %v301
      %v309 = vsub.f32 %v306, %v308
      %v310 = vmul.f32 %v304, %v307
      %v311 = vadd.f32 %v310, 1.0
      %vm312 = vcmp.gt.f32.partialorder %v311, %v309
      %v313 = vsel %vm312, 1.0, 0.0
      %v314 = vsel %vm312, %v307, 0.0
      %315 = vrot.lane.b32.xlu0 %v313, 127
      %v316 = vpop.permute.xlu0 %315
      %317 = vrot.lane.b32.xlu0 %v313, 15
      %v318 = vpop.permute.xlu0 %317
      %v319 = vsel %vm131, %v316, %v318
      %v320 = vadd.f32 %v313, %v319
      %321 = vrot.lane.b32.xlu0 %v314, 127
      %v322 = vpop.permute.xlu0 %321
      %323 = vrot.lane.b32.xlu0 %v314, 15
      %v324 = vpop.permute.xlu0 %323
      %v325 = vsel %vm131, %v322, %v324
      %v326 = vadd.f32 %v314, %v325
      %327 = vrot.lane.b32.xlu0 %v320, 126
      %v328 = vpop.permute.xlu0 %327
      %329 = vrot.lane.b32.xlu0 %v320, 14
      %v330 = vpop.permute.xlu0 %329
      %v331 = vsel %vm143, %v328, %v330
      %v332 = vadd.f32 %v320, %v331
      %333 = vrot.lane.b32.xlu0 %v326, 126
      %v334 = vpop.permute.xlu0 %333
      %335 = vrot.lane.b32.xlu0 %v326, 14
      %v336 = vpop.permute.xlu0 %335
      %v337 = vsel %vm143, %v334, %v336
      %v338 = vadd.f32 %v326, %v337
      %339 = vrot.lane.b32.xlu0 %v332, 124
      %v340 = vpop.permute.xlu0 %339
      %341 = vrot.lane.b32.xlu0 %v332, 12
      %v342 = vpop.permute.xlu0 %341
      %v343 = vsel %vm167, %v340, %v342
      %v344 = vadd.f32 %v332, %v343
      %345 = vrot.lane.b32.xlu0 %v338, 124
      %v346 = vpop.permute.xlu0 %345
      %347 = vrot.lane.b32.xlu0 %v338, 12
      %v348 = vpop.permute.xlu0 %347
      %v349 = vsel %vm167, %v346, %v348
      %v350 = vadd.f32 %v338, %v349
      %351 = vrot.lane.b32.xlu0 %v344, 120
      %v352 = vpop.permute.xlu0 %351
      %353 = vrot.lane.b32.xlu0 %v344, 8
      %v354 = vpop.permute.xlu0 %353
      %v355 = vsel %vm215, %v352, %v354
      %v356 = vadd.f32 %v344, %v355
      %357 = vrot.lane.b32.xlu0 %v350, 120
      %v358 = vpop.permute.xlu0 %357
      %359 = vrot.lane.b32.xlu0 %v350, 8
      %v360 = vpop.permute.xlu0 %359
      %v361 = vsel %vm215, %v358, %v360
      %v362 = vadd.f32 %v350, %v361
      %v363 = vsub.f32 %v362, 1.0
      %v364 = vrcp.pop %v356
      %v365 = vmul.f32 %v363, %v364
      %v366 = vsub.f32 %v307, %v365
      %v367 = vmax.f32 %v366, 0.0
      %368 = vst [vmem:[%s111] sm:$0xff] %v367
      %p369 = scmp.lt.s32.totalorder %s12, 1
      %s370 = scalar_select %p369, %s12, 1
      %s371 = smul.addr %s370, 8
      %s372 = scalar_lea.vmem %s1, %s371
      // Predicated region
      $region25: #{_lambda_.1} parent=23 // pred_check
        %p373 = pneg %p56
      $region26: #{_lambda_.1} parent=23 // pred_check_branch
        %375 = sbr.rel (%p373) target = $region28
      $region27: #{_lambda_.1} parent=23 // pred_region
        _
      $region28: #{_lambda_.1} parent=23 // pred_fallthru
        _
    $region24: #{_lambda_.1} parent=5 // pred_fallthru
      _
    %p376 = scmp.le.s32.totalorder 2, %s7
    // Predicated region
    $region29: #{_lambda_.1} parent=5 // pred_check
      %p377 = pneg %p376
    $region30: #{_lambda_.1} parent=5 // pred_check_branch
      %379 = sbr.rel (%p377) target = $region32
    $region31: #{_lambda_.1} parent=5 // pred_region
      %s380 = ssub.s32 %s7, 2
      // Predicated region
      $region33: #{_lambda_.1} parent=31 // pred_check
        %p381 = pneg %p62
      $region34: #{_lambda_.1} parent=31 // pred_check_branch
        %383 = sbr.rel (%p381) target = $region36
      $region35: #{_lambda_.1} parent=31 // pred_region
        %p384 = scmp.lt.s32.totalorder %s13, 1
        %s385 = scalar_select %p384, %s13, 1
        %s386 = smul.addr %s385, 8
        %s387 = scalar_lea.vmem %s1, %s386
      $region36: #{_lambda_.1} parent=31 // pred_fallthru
        _
    $region32: #{_lambda_.1} parent=5 // pred_fallthru
      _
  $region6: #{_lambda_.1} parent=0 // loop_footer
    %s11 = sadd.s32 1, %s7
  $region7: #{_lambda_.1} parent=0 // loop_footer_branch
    %6 = sbr.rel target = $region3
  $region8: #{_lambda_.1} parent=0 // loop_exit
    _

</llo_original>
